<compile_context>
chip_gen: v6e
topology: v6e:2x2x1
jax: 0.10.0
libtpu: 0.0.40
codegen_flags: <defaults>
</compile_context>

<pallas_src>
import jax
import jax.numpy as jnp
from jax.experimental import pallas as pl
from jax.experimental.pallas import tpu as pltpu


EPS = 1e-5


def add_layernorm_kernel(x_ref, y_ref, gamma_ref, beta_ref, o_ref):
    # x_ref, y_ref, o_ref: (TR, C) in VMEM; gamma/beta: (1, C), VMEM-resident.
    s = x_ref[...].astype(jnp.float32) + y_ref[...].astype(jnp.float32)

    # Single-pass moments: one sweep produces both lane reductions (XLU),
    # removing the serial mean -> centered -> variance dependency.
    inv_c = jnp.float32(1.0 / s.shape[-1])
    ssum = jnp.sum(s, axis=-1, keepdims=True)
    ssq = jnp.sum(s * s, axis=-1, keepdims=True)
    mean = ssum * inv_c
    var = ssq * inv_c - mean * mean
    var = jnp.maximum(var, 0.0)  # guard tiny negatives from f32 cancellation
    inv = jax.lax.rsqrt(var + EPS)

    gamma = gamma_ref[...].astype(jnp.float32)   # hoisted once per tile
    beta = beta_ref[...].astype(jnp.float32)

    o_ref[...] = ((s - mean) * inv * gamma + beta).astype(o_ref.dtype)


def add_layernorm(x, y, gamma, beta, *, block_rows=512):
    """x, y: (..., C); gamma, beta: (C,). Returns LayerNorm(x + y) over C."""
    assert x.shape == y.shape
    orig_shape = x.shape
    C = orig_shape[-1]
    rows = 1
    for d in orig_shape[:-1]:
        rows *= d

    x2 = x.reshape(rows, C)
    y2 = y.reshape(rows, C)
    g2 = gamma.reshape(1, C)
    b2 = beta.reshape(1, C)

    # Row tile: multiple of 8 sublanes; shrink for small inputs so a tiny
    # problem doesn't allocate a full 512-row block. cdiv handles the ragged
    # last tile (partial reads padded, partial stores masked; rows are
    # independent so padding never contaminates valid rows).
    tr = min(block_rows, ((rows + 7) // 8) * 8)
    grid = (pl.cdiv(rows, tr),)

    out = pl.pallas_call(
        add_layernorm_kernel,
        out_shape=jax.ShapeDtypeStruct((rows, C), x.dtype),
        grid=grid,
        in_specs=[
            pl.BlockSpec((tr, C), lambda i: (i, 0)),
            pl.BlockSpec((tr, C), lambda i: (i, 0)),
            pl.BlockSpec((1, C), lambda i: (0, 0)),
            pl.BlockSpec((1, C), lambda i: (0, 0)),
        ],
        out_specs=pl.BlockSpec((tr, C), lambda i: (i, 0)),
        compiler_params=pltpu.CompilerParams(
            dimension_semantics=("parallel",),
        ),
    )(x2, y2, g2, b2)

    return out.reshape(orig_shape)


def reference(x, y, gamma, beta):
    s = (x + y).astype(jnp.float32)
    mean = jnp.mean(s, axis=-1, keepdims=True)
    var = jnp.mean((s - mean) ** 2, axis=-1, keepdims=True)
    return ((s - mean) * jax.lax.rsqrt(var + EPS)) * gamma + beta


if __name__ == "__main__":
    key = jax.random.PRNGKey(0)
    k1, k2, k3, k4, k5, k6 = jax.random.split(key, 6)

    C = 1024
    # LayerNorm affine params, perturbed away from 1/0 so the affine path is
    # actually exercised.
    gamma = 1.0 + 0.02 * jax.random.normal(k3, (C,), dtype=jnp.float32)
    beta = 0.02 * jax.random.normal(k4, (C,), dtype=jnp.float32)

    # Case 1: the module's shape (1, 7, 7, 1024) -> 49 rows, single tile.
    B, H, W = 1, 7, 7
    x533 = jax.random.normal(k1, (B, H, W, C), dtype=jnp.float32)
    x547 = jax.random.normal(k2, (B, H, W, C), dtype=jnp.float32)

    out = add_layernorm(x533, x547, gamma, beta)
    out = jax.block_until_ready(out)
    ref = reference(x533, x547, gamma, beta)
    assert out.shape == (B, H, W, C)
    assert jnp.allclose(out, ref, atol=2e-4, rtol=2e-4)

    # Case 2: small multi-tile case with a ragged last tile to exercise the
    # pipelined/tiled path (288 rows, TR=128 -> grid of 3, last tile partial).
    xa = jax.random.normal(k5, (2, 12, 12, C), dtype=jnp.float32)
    xb = jax.random.normal(k6, (2, 12, 12, C), dtype=jnp.float32)
    out2 = add_layernorm(xa, xb, gamma, beta, block_rows=128)
    out2 = jax.block_until_ready(out2)
    ref2 = reference(xa, xb, gamma, beta)
    assert jnp.allclose(out2, ref2, atol=2e-4, rtol=2e-4)

    print("KERNEL_OK")
</pallas_src>

<mosaic_0001>
module attributes {stable_mosaic.version = 11 : i64} {
  func.func @add_layernorm_kernel(%arg0: i32, %arg1: memref<56x1024xf32, #tpu.memory_space<vmem>>, %arg2: memref<56x1024xf32, #tpu.memory_space<vmem>>, %arg3: memref<1x1024xf32, #tpu.memory_space<vmem>>, %arg4: memref<1x1024xf32, #tpu.memory_space<vmem>>, %arg5: memref<56x1024xf32, #tpu.memory_space<vmem>>) attributes {dimension_semantics = [#tpu.dimension_semantics<parallel>], iteration_bounds = array<i64: 1>, scalar_prefetch = 0 : i64, scratch_operands = 0 : i64, tpu.core_type = #tpu.core_type<tc>, window_params = [{transform_indices = @transform_0, window_bounds = array<i64: 56, 1024>}, {transform_indices = @transform_1, window_bounds = array<i64: 56, 1024>}, {pipeline_mode = #tpu.pipeline_mode<synchronous>, transform_indices = @transform_2, window_bounds = array<i64: 1, 1024>}, {pipeline_mode = #tpu.pipeline_mode<synchronous>, transform_indices = @transform_3, window_bounds = array<i64: 1, 1024>}, {transform_indices = @transform_4, window_bounds = array<i64: 56, 1024>}]} {
    %c0 = arith.constant 0 : index
    %c0_0 = arith.constant 0 : index
    %0 = vector.load %arg1[%c0, %c0_0] : memref<56x1024xf32, #tpu.memory_space<vmem>>, vector<56x1024xf32>
    %c0_1 = arith.constant 0 : index
    %c0_2 = arith.constant 0 : index
    %1 = vector.load %arg2[%c0_1, %c0_2] : memref<56x1024xf32, #tpu.memory_space<vmem>>, vector<56x1024xf32>
    %2 = arith.addf %0, %1 : vector<56x1024xf32>
    %cst = arith.constant dense<0.000000e+00> : vector<56xf32>
    %3 = vector.multi_reduction <add>, %2, %cst [1] : vector<56x1024xf32> to vector<56xf32>
    %4 = vector.shape_cast %3 : vector<56xf32> to vector<56x1xf32>
    %5 = arith.mulf %2, %2 : vector<56x1024xf32>
    %cst_3 = arith.constant dense<0.000000e+00> : vector<56xf32>
    %6 = vector.multi_reduction <add>, %5, %cst_3 [1] : vector<56x1024xf32> to vector<56xf32>
    %7 = vector.shape_cast %6 : vector<56xf32> to vector<56x1xf32>
    %cst_4 = arith.constant 9.765625E-4 : f32
    %8 = vector.broadcast %cst_4 : f32 to vector<56x1xf32>
    %9 = arith.mulf %4, %8 : vector<56x1xf32>
    %cst_5 = arith.constant 9.765625E-4 : f32
    %10 = vector.broadcast %cst_5 : f32 to vector<56x1xf32>
    %11 = arith.mulf %7, %10 : vector<56x1xf32>
    %12 = arith.mulf %9, %9 : vector<56x1xf32>
    %13 = arith.subf %11, %12 : vector<56x1xf32>
    %cst_6 = arith.constant 0.000000e+00 : f32
    %14 = vector.broadcast %cst_6 : f32 to vector<56x1xf32>
    %15 = arith.maximumf %13, %14 : vector<56x1xf32>
    %cst_7 = arith.constant 9.99999974E-6 : f32
    %16 = vector.broadcast %cst_7 : f32 to vector<56x1xf32>
    %17 = arith.addf %15, %16 : vector<56x1xf32>
    %18 = math.rsqrt %17 : vector<56x1xf32>
    %c0_8 = arith.constant 0 : index
    %c0_9 = arith.constant 0 : index
    %19 = vector.load %arg3[%c0_8, %c0_9] : memref<1x1024xf32, #tpu.memory_space<vmem>>, vector<1x1024xf32>
    %c0_10 = arith.constant 0 : index
    %c0_11 = arith.constant 0 : index
    %20 = vector.load %arg4[%c0_10, %c0_11] : memref<1x1024xf32, #tpu.memory_space<vmem>>, vector<1x1024xf32>
    %21 = vector.broadcast %9 : vector<56x1xf32> to vector<56x1024xf32>
    %22 = arith.subf %2, %21 : vector<56x1024xf32>
    %23 = vector.broadcast %18 : vector<56x1xf32> to vector<56x1024xf32>
    %24 = arith.mulf %22, %23 : vector<56x1024xf32>
    %25 = vector.broadcast %19 : vector<1x1024xf32> to vector<56x1024xf32>
    %26 = arith.mulf %24, %25 : vector<56x1024xf32>
    %27 = vector.broadcast %20 : vector<1x1024xf32> to vector<56x1024xf32>
    %28 = arith.addf %26, %27 : vector<56x1024xf32>
    %c0_12 = arith.constant 0 : index
    %c0_13 = arith.constant 0 : index
    %29 = vector.load %arg5[%c0_12, %c0_13] : memref<56x1024xf32, #tpu.memory_space<vmem>>, vector<56x1024xf32>
    tpu.vector_store %arg5[%c0_12, %c0_13], %28 {strides = array<i32>} : memref<56x1024xf32, #tpu.memory_space<vmem>>, vector<56x1024xf32>,
    return
  }
  func.func @transform_0(%arg0: i32) -> (i32, i32) {
    %c0_i32 = arith.constant 0 : i32
    %c0_i32_0 = arith.constant 0 : i32
    return %arg0, %c0_i32 : i32, i32
  }
  func.func @transform_1(%arg0: i32) -> (i32, i32) {
    %c0_i32 = arith.constant 0 : i32
    %c0_i32_0 = arith.constant 0 : i32
    return %arg0, %c0_i32 : i32, i32
  }
  func.func @transform_2(%arg0: i32) -> (i32, i32) {
    %c0_i32 = arith.constant 0 : i32
    %c0_i32_0 = arith.constant 0 : i32
    %c0_i32_1 = arith.constant 0 : i32
    return %c0_i32, %c0_i32_0 : i32, i32
  }
  func.func @transform_3(%arg0: i32) -> (i32, i32) {
    %c0_i32 = arith.constant 0 : i32
    %c0_i32_0 = arith.constant 0 : i32
    %c0_i32_1 = arith.constant 0 : i32
    return %c0_i32, %c0_i32_0 : i32, i32
  }
  func.func @transform_4(%arg0: i32) -> (i32, i32) {
    %c0_i32 = arith.constant 0 : i32
    %c0_i32_0 = arith.constant 0 : i32
    return %arg0, %c0_i32 : i32, i32
  }
}

</mosaic_0001>

<llo_original>
// kernel: tpu_custom_call.1
$region0: #{tpu_custom_call.1}
  #allocation0 [shape = 'u32[]', space=smem, size = 0x4, offset = 0x4, fixed_abs, tag = 'smem constant byte address 0x4 - core index']
  #allocation1 [shape = 'u32[144,128]{1,0:T(1,128)}', space=vmem, size = 0x12000, scoped, tag = 'internal scratch']
  %s0 = inlined_call_operand.hbm [shape: f32[49,1024], index: 0, kind: input, shape index: {}]
  %s1 = inlined_call_operand.hbm [shape: f32[49,1024], index: 1, kind: input, shape index: {}]
  %s2 = inlined_call_operand.hbm [shape: f32[1,1024], index: 2, kind: input, shape index: {}]
  %s3 = inlined_call_operand.hbm [shape: f32[1,1024], index: 3, kind: input, shape index: {}]
  %s4 = inlined_call_operand.hbm [shape: f32[49,1024], index: 4, kind: output, shape index: {}]
  %s5 = sld [smem:[#allocation0]]
  $region42: #{tpu_custom_call.1} parent=0
    _
  %s7 = ssub.s32 1, %s5
  %s8 = scalar_select 0, %s7, %s5
  $region1: #{tpu_custom_call.1} parent=0
    #allocation2 [shape = 'u8[229376]{0}', space=vmem, size = 0x38000, scoped, tag = 'input window, operand 0, single buffered']
    #allocation3 [shape = 's32[1]{0}', space=sflag, size = 0x4, scoped, tag = 'scoped memory for tpu_custom_call.1']
    #allocation4 [shape = 's32[1]{0}', space=sflag, size = 0x4, scoped, tag = 'scoped memory for tpu_custom_call.1']
    #allocation5 [shape = 'u8[229376]{0}', space=vmem, size = 0x38000, scoped, tag = 'input window, operand 1, single buffered']
    #allocation6 [shape = 's32[1]{0}', space=sflag, size = 0x4, scoped, tag = 'scoped memory for tpu_custom_call.1']
    #allocation7 [shape = 'u8[4096]{0}', space=vmem, size = 0x1000, scoped, tag = 'input window, operand 2, single buffered']
    #allocation8 [shape = 'u8[4096]{0}', space=vmem, size = 0x1000, scoped, tag = 'input window, operand 3, single buffered']
    #allocation9 [shape = 's32[1]{0}', space=sflag, size = 0x4, scoped, tag = 'scoped memory for tpu_custom_call.1']
    #allocation10 [shape = 'u8[229376]{0}', space=vmem, size = 0x38000, scoped, tag = 'output window, operand 0, single buffered']
    %9 = vsyncpa [#allocation3], 0
    %10 = vsyncpa [#allocation6], 0
    %11 = vsyncpa [#allocation9], 0
    %12 = vsyncpa [#allocation4], 0
    // Predicated region
    $region2: #{tpu_custom_call.1} parent=1 // pred_check
      _
    $region3: #{tpu_custom_call.1} parent=1 // pred_check_branch
      %14 = sbr.rel (0) target = $region5
    $region4: #{tpu_custom_call.1} parent=1 // pred_region
      %s16 = ssub.s32 7168, 7168
      %17 = vsyncadd [#allocation3], %s16
      %s18 = sshll.u32 [#allocation2], 4
      %s19 = int_to_ptr.vmem [resolvable:$true] %s18
      %24 = dma.hbm_to_vmem [thread:$0]  %s0, 7168, %s19, [#allocation3], 1024, 1024, 64
    $region5: #{tpu_custom_call.1} parent=1 // pred_fallthru
      _
    // Predicated region
    $region6: #{tpu_custom_call.1} parent=1 // pred_check
      _
    $region7: #{tpu_custom_call.1} parent=1 // pred_check_branch
      %26 = sbr.rel (0) target = $region9
    $region8: #{tpu_custom_call.1} parent=1 // pred_region
      %s28 = ssub.s32 7168, 7168
      %29 = vsyncadd [#allocation6], %s28
      %s30 = sshll.u32 [#allocation5], 4
      %s31 = int_to_ptr.vmem [resolvable:$true] %s30
      %36 = dma.hbm_to_vmem [thread:$0]  %s1, 7168, %s31, [#allocation6], 1024, 1024, 64
    $region9: #{tpu_custom_call.1} parent=1 // pred_fallthru
      _
    // Predicated region
    $region10: #{tpu_custom_call.1} parent=1 // pred_check
      _
    $region11: #{tpu_custom_call.1} parent=1 // pred_check_branch
      %38 = sbr.rel (0) target = $region13
    $region12: #{tpu_custom_call.1} parent=1 // pred_region
      %s40 = ssub.s32 128, 128
      %41 = vsyncadd [#allocation6], %s40
      %s43 = sshll.u32 [#allocation7], 4
      %s44 = int_to_ptr.vmem [resolvable:$true] %s43
      %46 = dma.hbm_to_vmem [thread:$0]  %s2, 128, %s44, [#allocation6]
    $region13: #{tpu_custom_call.1} parent=1 // pred_fallthru
      _
    // Predicated region
    $region14: #{tpu_custom_call.1} parent=1 // pred_check
      _
    $region15: #{tpu_custom_call.1} parent=1 // pred_check_branch
      %48 = sbr.rel (0) target = $region17
    $region16: #{tpu_custom_call.1} parent=1 // pred_region
      %s50 = ssub.s32 128, 128
      %51 = vsyncadd [#allocation9], %s50
      %s53 = sshll.u32 [#allocation8], 4
      %s54 = int_to_ptr.vmem [resolvable:$true] %s53
      %56 = dma.hbm_to_vmem [thread:$0]  %s3, 128, %s54, [#allocation9]
    $region17: #{tpu_custom_call.1} parent=1 // pred_fallthru
      _
    // Predicated region
    $region18: #{tpu_custom_call.1} parent=1 // pred_check
      _
    $region19: #{tpu_custom_call.1} parent=1 // pred_check_branch
      %58 = sbr.rel (0) target = $region21
    $region20: #{tpu_custom_call.1} parent=1 // pred_region
      %59 = dma.done [#allocation3], 7168
    $region21: #{tpu_custom_call.1} parent=1 // pred_fallthru
      _
    // Predicated region
    $region22: #{tpu_custom_call.1} parent=1 // pred_check
      _
    $region23: #{tpu_custom_call.1} parent=1 // pred_check_branch
      %61 = sbr.rel (0) target = $region25
    $region24: #{tpu_custom_call.1} parent=1 // pred_region
      %62 = dma.done [#allocation6], 7168
    $region25: #{tpu_custom_call.1} parent=1 // pred_fallthru
      _
    // Predicated region
    $region26: #{tpu_custom_call.1} parent=1 // pred_check
      _
    $region27: #{tpu_custom_call.1} parent=1 // pred_check_branch
      %64 = sbr.rel (0) target = $region29
    $region28: #{tpu_custom_call.1} parent=1 // pred_region
      %65 = dma.done [#allocation6], 128
    $region29: #{tpu_custom_call.1} parent=1 // pred_fallthru
      _
    // Predicated region
    $region30: #{tpu_custom_call.1} parent=1 // pred_check
      _
    $region31: #{tpu_custom_call.1} parent=1 // pred_check_branch
      %67 = sbr.rel (0) target = $region33
    $region32: #{tpu_custom_call.1} parent=1 // pred_region
      %68 = dma.done [#allocation9], 128
    $region33: #{tpu_custom_call.1} parent=1 // pred_fallthru
      _
    %v69 = vld [vmem:[#allocation2] sm:$0xff]
    %v70 = vld [vmem:[#allocation2 + $0x8] sm:$0xff]
    %v71 = vld [vmem:[#allocation2 + $0x10] sm:$0xff]
    %v72 = vld [vmem:[#allocation2 + $0x18] sm:$0xff]
    %v73 = vld [vmem:[#allocation2 + $0x20] sm:$0xff]
    %v74 = vld [vmem:[#allocation2 + $0x28] sm:$0xff]
    %v75 = vld [vmem:[#allocation2 + $0x30] sm:$0xff]
    %v76 = vld [vmem:[#allocation2 + $0x38] sm:$0xff]
    %v77 = vld [vmem:[#allocation2 + $0x40] sm:$0xff]
    %v78 = vld [vmem:[#allocation2 + $0x48] sm:$0xff]
    %v79 = vld [vmem:[#allocation2 + $0x50] sm:$0xff]
    %v80 = vld [vmem:[#allocation2 + $0x58] sm:$0xff]
    %v81 = vld [vmem:[#allocation2 + $0x60] sm:$0xff]
    %v82 = vld [vmem:[#allocation2 + $0x68] sm:$0xff]
    %v83 = vld [vmem:[#allocation2 + $0x70] sm:$0xff]
    %v84 = vld [vmem:[#allocation2 + $0x78] sm:$0xff]
    %v85 = vld [vmem:[#allocation2 + $0x80] sm:$0xff]
    %v86 = vld [vmem:[#allocation2 + $0x88] sm:$0xff]
    %v87 = vld [vmem:[#allocation2 + $0x90] sm:$0xff]
    %v88 = vld [vmem:[#allocation2 + $0x98] sm:$0xff]
    %v89 = vld [vmem:[#allocation2 + $0xa0] sm:$0xff]
    %v90 = vld [vmem:[#allocation2 + $0xa8] sm:$0xff]
    %v91 = vld [vmem:[#allocation2 + $0xb0] sm:$0xff]
    %v92 = vld [vmem:[#allocation2 + $0xb8] sm:$0xff]
    %v93 = vld [vmem:[#allocation2 + $0xc0] sm:$0xff]
    %v94 = vld [vmem:[#allocation2 + $0xc8] sm:$0xff]
    %v95 = vld [vmem:[#allocation2 + $0xd0] sm:$0xff]
    %v96 = vld [vmem:[#allocation2 + $0xd8] sm:$0xff]
    %v97 = vld [vmem:[#allocation2 + $0xe0] sm:$0xff]
    %v98 = vld [vmem:[#allocation2 + $0xe8] sm:$0xff]
    %v99 = vld [vmem:[#allocation2 + $0xf0] sm:$0xff]
    %v100 = vld [vmem:[#allocation2 + $0xf8] sm:$0xff]
    %v101 = vld [vmem:[#allocation2 + $0x100] sm:$0xff]
    %v102 = vld [vmem:[#allocation2 + $0x108] sm:$0xff]
    %v103 = vld [vmem:[#allocation2 + $0x110] sm:$0xff]
    %v104 = vld [vmem:[#allocation2 + $0x118] sm:$0xff]
    %v105 = vld [vmem:[#allocation2 + $0x120] sm:$0xff]
    %v106 = vld [vmem:[#allocation2 + $0x128] sm:$0xff]
    %v107 = vld [vmem:[#allocation2 + $0x130] sm:$0xff]
    %v108 = vld [vmem:[#allocation2 + $0x138] sm:$0xff]
    %v109 = vld [vmem:[#allocation2 + $0x140] sm:$0xff]
    %v110 = vld [vmem:[#allocation2 + $0x148] sm:$0xff]
    %v111 = vld [vmem:[#allocation2 + $0x150] sm:$0xff]
    %v112 = vld [vmem:[#allocation2 + $0x158] sm:$0xff]
    %v113 = vld [vmem:[#allocation2 + $0x160] sm:$0xff]
    %v114 = vld [vmem:[#allocation2 + $0x168] sm:$0xff]
    %v115 = vld [vmem:[#allocation2 + $0x170] sm:$0xff]
    %v116 = vld [vmem:[#allocation2 + $0x178] sm:$0xff]
    %v117 = vld [vmem:[#allocation2 + $0x180] sm:$0xff]
    %v118 = vld [vmem:[#allocation2 + $0x188] sm:$0xff]
    %v119 = vld [vmem:[#allocation2 + $0x190] sm:$0xff]
    %v120 = vld [vmem:[#allocation2 + $0x198] sm:$0xff]
    %v121 = vld [vmem:[#allocation2 + $0x1a0] sm:$0xff]
    %v122 = vld [vmem:[#allocation2 + $0x1a8] sm:$0xff]
    %v123 = vld [vmem:[#allocation2 + $0x1b0] sm:$0xff]
    %v124 = vld [vmem:[#allocation2 + $0x1b8] sm:$0xff]
    %v125 = vld [vmem:[#allocation5] sm:$0xff]
    %v126 = vld [vmem:[#allocation5 + $0x8] sm:$0xff]
    %v127 = vld [vmem:[#allocation5 + $0x10] sm:$0xff]
    %v128 = vld [vmem:[#allocation5 + $0x18] sm:$0xff]
    %v129 = vld [vmem:[#allocation5 + $0x20] sm:$0xff]
    %v130 = vld [vmem:[#allocation5 + $0x28] sm:$0xff]
    %v131 = vld [vmem:[#allocation5 + $0x30] sm:$0xff]
    %v132 = vld [vmem:[#allocation5 + $0x38] sm:$0xff]
    %v133 = vld [vmem:[#allocation5 + $0x40] sm:$0xff]
    %v134 = vld [vmem:[#allocation5 + $0x48] sm:$0xff]
    %v135 = vld [vmem:[#allocation5 + $0x50] sm:$0xff]
    %v136 = vld [vmem:[#allocation5 + $0x58] sm:$0xff]
    %v137 = vld [vmem:[#allocation5 + $0x60] sm:$0xff]
    %v138 = vld [vmem:[#allocation5 + $0x68] sm:$0xff]
    %v139 = vld [vmem:[#allocation5 + $0x70] sm:$0xff]
    %v140 = vld [vmem:[#allocation5 + $0x78] sm:$0xff]
    %v141 = vld [vmem:[#allocation5 + $0x80] sm:$0xff]
    %v142 = vld [vmem:[#allocation5 + $0x88] sm:$0xff]
    %v143 = vld [vmem:[#allocation5 + $0x90] sm:$0xff]
    %v144 = vld [vmem:[#allocation5 + $0x98] sm:$0xff]
    %v145 = vld [vmem:[#allocation5 + $0xa0] sm:$0xff]
    %v146 = vld [vmem:[#allocation5 + $0xa8] sm:$0xff]
    %v147 = vld [vmem:[#allocation5 + $0xb0] sm:$0xff]
    %v148 = vld [vmem:[#allocation5 + $0xb8] sm:$0xff]
    %v149 = vld [vmem:[#allocation5 + $0xc0] sm:$0xff]
    %v150 = vld [vmem:[#allocation5 + $0xc8] sm:$0xff]
    %v151 = vld [vmem:[#allocation5 + $0xd0] sm:$0xff]
    %v152 = vld [vmem:[#allocation5 + $0xd8] sm:$0xff]
    %v153 = vld [vmem:[#allocation5 + $0xe0] sm:$0xff]
    %v154 = vld [vmem:[#allocation5 + $0xe8] sm:$0xff]
    %v155 = vld [vmem:[#allocation5 + $0xf0] sm:$0xff]
    %v156 = vld [vmem:[#allocation5 + $0xf8] sm:$0xff]
    %v157 = vld [vmem:[#allocation5 + $0x100] sm:$0xff]
    %v158 = vld [vmem:[#allocation5 + $0x108] sm:$0xff]
    %v159 = vld [vmem:[#allocation5 + $0x110] sm:$0xff]
    %v160 = vld [vmem:[#allocation5 + $0x118] sm:$0xff]
    %v161 = vld [vmem:[#allocation5 + $0x120] sm:$0xff]
    %v162 = vld [vmem:[#allocation5 + $0x128] sm:$0xff]
    %v163 = vld [vmem:[#allocation5 + $0x130] sm:$0xff]
    %v164 = vld [vmem:[#allocation5 + $0x138] sm:$0xff]
    %v165 = vld [vmem:[#allocation5 + $0x140] sm:$0xff]
    %v166 = vld [vmem:[#allocation5 + $0x148] sm:$0xff]
    %v167 = vld [vmem:[#allocation5 + $0x150] sm:$0xff]
    %v168 = vld [vmem:[#allocation5 + $0x158] sm:$0xff]
    %v169 = vld [vmem:[#allocation5 + $0x160] sm:$0xff]
    %v170 = vld [vmem:[#allocation5 + $0x168] sm:$0xff]
    %v171 = vld [vmem:[#allocation5 + $0x170] sm:$0xff]
    %v172 = vld [vmem:[#allocation5 + $0x178] sm:$0xff]
    %v173 = vld [vmem:[#allocation5 + $0x180] sm:$0xff]
    %v174 = vld [vmem:[#allocation5 + $0x188] sm:$0xff]
    %v175 = vld [vmem:[#allocation5 + $0x190] sm:$0xff]
    %v176 = vld [vmem:[#allocation5 + $0x198] sm:$0xff]
    %v177 = vld [vmem:[#allocation5 + $0x1a0] sm:$0xff]
    %v178 = vld [vmem:[#allocation5 + $0x1a8] sm:$0xff]
    %v179 = vld [vmem:[#allocation5 + $0x1b0] sm:$0xff]
    %v180 = vld [vmem:[#allocation5 + $0x1b8] sm:$0xff]
    %v181 = vadd.f32 %v69, %v125
    %v182 = vadd.f32 %v70, %v126
    %v183 = vadd.f32 %v71, %v127
    %v184 = vadd.f32 %v72, %v128
    %v185 = vadd.f32 %v73, %v129
    %v186 = vadd.f32 %v74, %v130
    %v187 = vadd.f32 %v75, %v131
    %v188 = vadd.f32 %v76, %v132
    %v189 = vadd.f32 %v77, %v133
    %v190 = vadd.f32 %v78, %v134
    %v191 = vadd.f32 %v79, %v135
    %v192 = vadd.f32 %v80, %v136
    %v193 = vadd.f32 %v81, %v137
    %v194 = vadd.f32 %v82, %v138
    %v195 = vadd.f32 %v83, %v139
    %v196 = vadd.f32 %v84, %v140
    %v197 = vadd.f32 %v85, %v141
    %v198 = vadd.f32 %v86, %v142
    %v199 = vadd.f32 %v87, %v143
    %v200 = vadd.f32 %v88, %v144
    %v201 = vadd.f32 %v89, %v145
    %v202 = vadd.f32 %v90, %v146
    %v203 = vadd.f32 %v91, %v147
    %v204 = vadd.f32 %v92, %v148
    %v205 = vadd.f32 %v93, %v149
    %v206 = vadd.f32 %v94, %v150
    %v207 = vadd.f32 %v95, %v151
    %v208 = vadd.f32 %v96, %v152
    %v209 = vadd.f32 %v97, %v153
    %v210 = vadd.f32 %v98, %v154
    %v211 = vadd.f32 %v99, %v155
    %v212 = vadd.f32 %v100, %v156
    %v213 = vadd.f32 %v101, %v157
    %v214 = vadd.f32 %v102, %v158
    %v215 = vadd.f32 %v103, %v159
    %v216 = vadd.f32 %v104, %v160
    %v217 = vadd.f32 %v105, %v161
    %v218 = vadd.f32 %v106, %v162
    %v219 = vadd.f32 %v107, %v163
    %v220 = vadd.f32 %v108, %v164
    %v221 = vadd.f32 %v109, %v165
    %v222 = vadd.f32 %v110, %v166
    %v223 = vadd.f32 %v111, %v167
    %v224 = vadd.f32 %v112, %v168
    %v225 = vadd.f32 %v113, %v169
    %v226 = vadd.f32 %v114, %v170
    %v227 = vadd.f32 %v115, %v171
    %v228 = vadd.f32 %v116, %v172
    %v229 = vadd.f32 %v117, %v173
    %v230 = vadd.f32 %v118, %v174
    %v231 = vadd.f32 %v119, %v175
    %v232 = vadd.f32 %v120, %v176
    %v233 = vadd.f32 %v121, %v177
    %v234 = vadd.f32 %v122, %v178
    %v235 = vadd.f32 %v123, %v179
    %v236 = vadd.f32 %v124, %v180
    %v237 = vadd.f32 %v181, %v182
    %v238 = vadd.f32 %v237, %v183
    %v239 = vadd.f32 %v238, %v184
    %v240 = vadd.f32 %v239, %v185
    %v241 = vadd.f32 %v240, %v186
    %v242 = vadd.f32 %v241, %v187
    %v243 = vadd.f32 %v242, %v188
    %244 = vadd.xlane.f32.xlu0 %v243
    %v245 = vpop.xlane.xlu0 %244
    %v246 = vadd.f32 %v189, %v190
    %v247 = vadd.f32 %v246, %v191
    %v248 = vadd.f32 %v247, %v192
    %v249 = vadd.f32 %v248, %v193
    %v250 = vadd.f32 %v249, %v194
    %v251 = vadd.f32 %v250, %v195
    %v252 = vadd.f32 %v251, %v196
    %253 = vadd.xlane.f32.xlu0 %v252
    %v254 = vpop.xlane.xlu0 %253
    %v255 = vadd.f32 %v197, %v198
    %v256 = vadd.f32 %v255, %v199
    %v257 = vadd.f32 %v256, %v200
    %v258 = vadd.f32 %v257, %v201
    %v259 = vadd.f32 %v258, %v202
    %v260 = vadd.f32 %v259, %v203
    %v261 = vadd.f32 %v260, %v204
    %262 = vadd.xlane.f32.xlu0 %v261
    %v263 = vpop.xlane.xlu0 %262
    %v264 = vadd.f32 %v205, %v206
    %v265 = vadd.f32 %v264, %v207
    %v266 = vadd.f32 %v265, %v208
    %v267 = vadd.f32 %v266, %v209
    %v268 = vadd.f32 %v267, %v210
    %v269 = vadd.f32 %v268, %v211
    %v270 = vadd.f32 %v269, %v212
    %271 = vadd.xlane.f32.xlu0 %v270
    %v272 = vpop.xlane.xlu0 %271
    %v273 = vadd.f32 %v213, %v214
    %v274 = vadd.f32 %v273, %v215
    %v275 = vadd.f32 %v274, %v216
    %v276 = vadd.f32 %v275, %v217
    %v277 = vadd.f32 %v276, %v218
    %v278 = vadd.f32 %v277, %v219
    %v279 = vadd.f32 %v278, %v220
    %280 = vadd.xlane.f32.xlu0 %v279
    %v281 = vpop.xlane.xlu0 %280
    %v282 = vadd.f32 %v221, %v222
    %v283 = vadd.f32 %v282, %v223
    %v284 = vadd.f32 %v283, %v224
    %v285 = vadd.f32 %v284, %v225
    %v286 = vadd.f32 %v285, %v226
    %v287 = vadd.f32 %v286, %v227
    %v288 = vadd.f32 %v287, %v228
    %289 = vadd.xlane.f32.xlu0 %v288
    %v290 = vpop.xlane.xlu0 %289
    %v291 = vadd.f32 %v229, %v230
    %v292 = vadd.f32 %v291, %v231
    %v293 = vadd.f32 %v292, %v232
    %v294 = vadd.f32 %v293, %v233
    %v295 = vadd.f32 %v294, %v234
    %v296 = vadd.f32 %v295, %v235
    %v297 = vadd.f32 %v296, %v236
    %298 = vadd.xlane.f32.xlu0 %v297
    %v299 = vpop.xlane.xlu0 %298
    %v300 = vmul.f32 %v181, %v181
    %v301 = vmul.f32 %v182, %v182
    %v302 = vmul.f32 %v183, %v183
    %v303 = vmul.f32 %v184, %v184
    %v304 = vmul.f32 %v185, %v185
    %v305 = vmul.f32 %v186, %v186
    %v306 = vmul.f32 %v187, %v187
    %v307 = vmul.f32 %v188, %v188
    %v308 = vmul.f32 %v189, %v189
    %v309 = vmul.f32 %v190, %v190
    %v310 = vmul.f32 %v191, %v191
    %v311 = vmul.f32 %v192, %v192
    %v312 = vmul.f32 %v193, %v193
    %v313 = vmul.f32 %v194, %v194
    %v314 = vmul.f32 %v195, %v195
    %v315 = vmul.f32 %v196, %v196
    %v316 = vmul.f32 %v197, %v197
    %v317 = vmul.f32 %v198, %v198
    %v318 = vmul.f32 %v199, %v199
    %v319 = vmul.f32 %v200, %v200
    %v320 = vmul.f32 %v201, %v201
    %v321 = vmul.f32 %v202, %v202
    %v322 = vmul.f32 %v203, %v203
    %v323 = vmul.f32 %v204, %v204
    %v324 = vmul.f32 %v205, %v205
    %v325 = vmul.f32 %v206, %v206
    %v326 = vmul.f32 %v207, %v207
    %v327 = vmul.f32 %v208, %v208
    %v328 = vmul.f32 %v209, %v209
    %v329 = vmul.f32 %v210, %v210
    %v330 = vmul.f32 %v211, %v211
    %v331 = vmul.f32 %v212, %v212
    %v332 = vmul.f32 %v213, %v213
    %v333 = vmul.f32 %v214, %v214
    %v334 = vmul.f32 %v215, %v215
    %v335 = vmul.f32 %v216, %v216
    %v336 = vmul.f32 %v217, %v217
    %v337 = vmul.f32 %v218, %v218
    %v338 = vmul.f32 %v219, %v219
    %v339 = vmul.f32 %v220, %v220
    %v340 = vmul.f32 %v221, %v221
    %v341 = vmul.f32 %v222, %v222
    %v342 = vmul.f32 %v223, %v223
    %v343 = vmul.f32 %v224, %v224
    %v344 = vmul.f32 %v225, %v225
    %v345 = vmul.f32 %v226, %v226
    %v346 = vmul.f32 %v227, %v227
    %v347 = vmul.f32 %v228, %v228
    %v348 = vmul.f32 %v229, %v229
    %v349 = vmul.f32 %v230, %v230
    %v350 = vmul.f32 %v231, %v231
    %v351 = vmul.f32 %v232, %v232
    %v352 = vmul.f32 %v233, %v233
    %v353 = vmul.f32 %v234, %v234
    %v354 = vmul.f32 %v235, %v235
    %v355 = vmul.f32 %v236, %v236
    %v356 = vadd.f32 %v300, %v301
    %v357 = vadd.f32 %v356, %v302
    %v358 = vadd.f32 %v357, %v303
    %v359 = vadd.f32 %v358, %v304
    %v360 = vadd.f32 %v359, %v305
    %v361 = vadd.f32 %v360, %v306
    %v362 = vadd.f32 %v361, %v307
    %363 = vadd.xlane.f32.xlu0 %v362
    %v364 = vpop.xlane.xlu0 %363
    %v365 = vadd.f32 %v308, %v309
    %v366 = vadd.f32 %v365, %v310
    %v367 = vadd.f32 %v366, %v311
    %v368 = vadd.f32 %v367, %v312
    %v369 = vadd.f32 %v368, %v313
    %v370 = vadd.f32 %v369, %v314
    %v371 = vadd.f32 %v370, %v315
    %372 = vadd.xlane.f32.xlu0 %v371
    %v373 = vpop.xlane.xlu0 %372
    %v374 = vadd.f32 %v316, %v317
    %v375 = vadd.f32 %v374, %v318
    %v376 = vadd.f32 %v375, %v319
    %v377 = vadd.f32 %v376, %v320
    %v378 = vadd.f32 %v377, %v321
    %v379 = vadd.f32 %v378, %v322
    %v380 = vadd.f32 %v379, %v323
    %381 = vadd.xlane.f32.xlu0 %v380
    %v382 = vpop.xlane.xlu0 %381
    %v383 = vadd.f32 %v324, %v325
    %v384 = vadd.f32 %v383, %v326
    %v385 = vadd.f32 %v384, %v327
    %v386 = vadd.f32 %v385, %v328
    %v387 = vadd.f32 %v386, %v329
    %v388 = vadd.f32 %v387, %v330
    %v389 = vadd.f32 %v388, %v331
    %390 = vadd.xlane.f32.xlu0 %v389
    %v391 = vpop.xlane.xlu0 %390
    %v392 = vadd.f32 %v332, %v333
    %v393 = vadd.f32 %v392, %v334
    %v394 = vadd.f32 %v393, %v335
    %v395 = vadd.f32 %v394, %v336
    %v396 = vadd.f32 %v395, %v337
    %v397 = vadd.f32 %v396, %v338
    %v398 = vadd.f32 %v397, %v339
    %399 = vadd.xlane.f32.xlu0 %v398
    %v400 = vpop.xlane.xlu0 %399
    %v401 = vadd.f32 %v340, %v341
    %v402 = vadd.f32 %v401, %v342
    %v403 = vadd.f32 %v402, %v343
    %v404 = vadd.f32 %v403, %v344
    %v405 = vadd.f32 %v404, %v345
    %v406 = vadd.f32 %v405, %v346
    %v407 = vadd.f32 %v406, %v347
    %408 = vadd.xlane.f32.xlu0 %v407
    %v409 = vpop.xlane.xlu0 %408
    %v410 = vadd.f32 %v348, %v349
    %v411 = vadd.f32 %v410, %v350
    %v412 = vadd.f32 %v411, %v351
    %v413 = vadd.f32 %v412, %v352
    %v414 = vadd.f32 %v413, %v353
    %v415 = vadd.f32 %v414, %v354
    %v416 = vadd.f32 %v415, %v355
    %417 = vadd.xlane.f32.xlu0 %v416
    %v418 = vpop.xlane.xlu0 %417
    %v419 = vmul.f32 %v245, 0.0009765625
    %v420 = vmul.f32 %v254, 0.0009765625
    %v421 = vmul.f32 %v263, 0.0009765625
    %v422 = vmul.f32 %v272, 0.0009765625
    %v423 = vmul.f32 %v281, 0.0009765625
    %v424 = vmul.f32 %v290, 0.0009765625
    %v425 = vmul.f32 %v299, 0.0009765625
    %v426 = vmul.f32 %v364, 0.0009765625
    %v427 = vmul.f32 %v373, 0.0009765625
    %v428 = vmul.f32 %v382, 0.0009765625
    %v429 = vmul.f32 %v391, 0.0009765625
    %v430 = vmul.f32 %v400, 0.0009765625
    %v431 = vmul.f32 %v409, 0.0009765625
    %v432 = vmul.f32 %v418, 0.0009765625
    %v433 = vmul.f32 %v419, %v419
    %v434 = vmul.f32 %v420, %v420
    %v435 = vmul.f32 %v421, %v421
    %v436 = vmul.f32 %v422, %v422
    %v437 = vmul.f32 %v423, %v423
    %v438 = vmul.f32 %v424, %v424
    %v439 = vmul.f32 %v425, %v425
    %v440 = vsub.f32 %v426, %v433
    %v441 = vsub.f32 %v427, %v434
    %v442 = vsub.f32 %v428, %v435
    %v443 = vsub.f32 %v429, %v436
    %v444 = vsub.f32 %v430, %v437
    %v445 = vsub.f32 %v431, %v438
    %v446 = vsub.f32 %v432, %v439
    %v447 = vmax.f32 %v440, 0.0
    %v448 = vmax.f32 %v441, 0.0
    %v449 = vmax.f32 %v442, 0.0
    %v450 = vmax.f32 %v443, 0.0
    %v451 = vmax.f32 %v444, 0.0
    %v452 = vmax.f32 %v445, 0.0
    %v453 = vmax.f32 %v446, 0.0
    %v454 = vadd.f32 %v447, 1e-05
    %v455 = vadd.f32 %v448, 1e-05
    %v456 = vadd.f32 %v449, 1e-05
    %v457 = vadd.f32 %v450, 1e-05
    %v458 = vadd.f32 %v451, 1e-05
    %v459 = vadd.f32 %v452, 1e-05
    %v460 = vadd.f32 %v453, 1e-05
    %v461 = vrsqrt.pop %v454
    %v462 = vrsqrt.pop %v455
    %v463 = vrsqrt.pop %v456
    %v464 = vrsqrt.pop %v457
    %v465 = vrsqrt.pop %v458
    %v466 = vrsqrt.pop %v459
    %v467 = vrsqrt.pop %v460
    %v468 = vld [vmem:[#allocation7] sm:$0xff]
    %v469 = vld [vmem:[#allocation8] sm:$0xff]
    %v470 = vsub.f32 %v181, %v419
    %v471 = vsub.f32 %v182, %v419
    %v472 = vsub.f32 %v183, %v419
    %v473 = vsub.f32 %v184, %v419
    %v474 = vsub.f32 %v185, %v419
    %v475 = vsub.f32 %v186, %v419
    %v476 = vsub.f32 %v187, %v419
    %v477 = vsub.f32 %v188, %v419
    %v478 = vsub.f32 %v189, %v420
    %v479 = vsub.f32 %v190, %v420
    %v480 = vsub.f32 %v191, %v420
    %v481 = vsub.f32 %v192, %v420
    %v482 = vsub.f32 %v193, %v420
    %v483 = vsub.f32 %v194, %v420
    %v484 = vsub.f32 %v195, %v420
    %v485 = vsub.f32 %v196, %v420
    %v486 = vsub.f32 %v197, %v421
    %v487 = vsub.f32 %v198, %v421
    %v488 = vsub.f32 %v199, %v421
    %v489 = vsub.f32 %v200, %v421
    %v490 = vsub.f32 %v201, %v421
    %v491 = vsub.f32 %v202, %v421
    %v492 = vsub.f32 %v203, %v421
    %v493 = vsub.f32 %v204, %v421
    %v494 = vsub.f32 %v205, %v422
    %v495 = vsub.f32 %v206, %v422
    %v496 = vsub.f32 %v207, %v422
    %v497 = vsub.f32 %v208, %v422
    %v498 = vsub.f32 %v209, %v422
    %v499 = vsub.f32 %v210, %v422
    %v500 = vsub.f32 %v211, %v422
    %v501 = vsub.f32 %v212, %v422
    %v502 = vsub.f32 %v213, %v423
    %v503 = vsub.f32 %v214, %v423
    %v504 = vsub.f32 %v215, %v423
    %v505 = vsub.f32 %v216, %v423
    %v506 = vsub.f32 %v217, %v423
    %v507 = vsub.f32 %v218, %v423
    %v508 = vsub.f32 %v219, %v423
    %v509 = vsub.f32 %v220, %v423
    %v510 = vsub.f32 %v221, %v424
    %v511 = vsub.f32 %v222, %v424
    %v512 = vsub.f32 %v223, %v424
    %v513 = vsub.f32 %v224, %v424
    %v514 = vsub.f32 %v225, %v424
    %v515 = vsub.f32 %v226, %v424
    %v516 = vsub.f32 %v227, %v424
    %v517 = vsub.f32 %v228, %v424
    %v518 = vsub.f32 %v229, %v425
    %v519 = vsub.f32 %v230, %v425
    %v520 = vsub.f32 %v231, %v425
    %v521 = vsub.f32 %v232, %v425
    %v522 = vsub.f32 %v233, %v425
    %v523 = vsub.f32 %v234, %v425
    %v524 = vsub.f32 %v235, %v425
    %v525 = vsub.f32 %v236, %v425
    %v526 = vmul.f32 %v470, %v461
    %v527 = vmul.f32 %v471, %v461
    %v528 = vmul.f32 %v472, %v461
    %v529 = vmul.f32 %v473, %v461
    %v530 = vmul.f32 %v474, %v461
    %v531 = vmul.f32 %v475, %v461
    %v532 = vmul.f32 %v476, %v461
    %v533 = vmul.f32 %v477, %v461
    %v534 = vmul.f32 %v478, %v462
    %v535 = vmul.f32 %v479, %v462
    %v536 = vmul.f32 %v480, %v462
    %v537 = vmul.f32 %v481, %v462
    %v538 = vmul.f32 %v482, %v462
    %v539 = vmul.f32 %v483, %v462
    %v540 = vmul.f32 %v484, %v462
    %v541 = vmul.f32 %v485, %v462
    %v542 = vmul.f32 %v486, %v463
    %v543 = vmul.f32 %v487, %v463
    %v544 = vmul.f32 %v488, %v463
    %v545 = vmul.f32 %v489, %v463
    %v546 = vmul.f32 %v490, %v463
    %v547 = vmul.f32 %v491, %v463
    %v548 = vmul.f32 %v492, %v463
    %v549 = vmul.f32 %v493, %v463
    %v550 = vmul.f32 %v494, %v464
    %v551 = vmul.f32 %v495, %v464
    %v552 = vmul.f32 %v496, %v464
    %v553 = vmul.f32 %v497, %v464
    %v554 = vmul.f32 %v498, %v464
    %v555 = vmul.f32 %v499, %v464
    %v556 = vmul.f32 %v500, %v464
    %v557 = vmul.f32 %v501, %v464
    %v558 = vmul.f32 %v502, %v465
    %v559 = vmul.f32 %v503, %v465
    %v560 = vmul.f32 %v504, %v465
    %v561 = vmul.f32 %v505, %v465
    %v562 = vmul.f32 %v506, %v465
    %v563 = vmul.f32 %v507, %v465
    %v564 = vmul.f32 %v508, %v465
    %v565 = vmul.f32 %v509, %v465
    %v566 = vmul.f32 %v510, %v466
    %v567 = vmul.f32 %v511, %v466
    %v568 = vmul.f32 %v512, %v466
    %v569 = vmul.f32 %v513, %v466
    %v570 = vmul.f32 %v514, %v466
    %v571 = vmul.f32 %v515, %v466
    %v572 = vmul.f32 %v516, %v466
    %v573 = vmul.f32 %v517, %v466
    %v574 = vmul.f32 %v518, %v467
    %v575 = vmul.f32 %v519, %v467
    %v576 = vmul.f32 %v520, %v467
    %v577 = vmul.f32 %v521, %v467
    %v578 = vmul.f32 %v522, %v467
    %v579 = vmul.f32 %v523, %v467
    %v580 = vmul.f32 %v524, %v467
    %v581 = vmul.f32 %v525, %v467
    %v583 = vlaneseq
    %v584 = vshrl.u32 %v583, 7
    %v585 = vsub.s32 0, %v584
    %v586 = vrot.slane %v468, %v585
    %v587 = vlaneseq
    %v588 = vshrl.u32 %v587, 7
    %v589 = vsub.s32 1, %v588
    %v590 = vrot.slane %v468, %v589
    %v591 = vlaneseq
    %v592 = vshrl.u32 %v591, 7
    %v593 = vsub.s32 2, %v592
    %v594 = vrot.slane %v468, %v593
    %v595 = vlaneseq
    %v596 = vshrl.u32 %v595, 7
    %v597 = vsub.s32 3, %v596
    %v598 = vrot.slane %v468, %v597
    %v599 = vlaneseq
    %v600 = vshrl.u32 %v599, 7
    %v601 = vsub.s32 4, %v600
    %v602 = vrot.slane %v468, %v601
    %v603 = vlaneseq
    %v604 = vshrl.u32 %v603, 7
    %v605 = vsub.s32 5, %v604
    %v606 = vrot.slane %v468, %v605
    %v607 = vlaneseq
    %v608 = vshrl.u32 %v607, 7
    %v609 = vsub.s32 6, %v608
    %v610 = vrot.slane %v468, %v609
    %v611 = vlaneseq
    %v612 = vshrl.u32 %v611, 7
    %v613 = vsub.s32 7, %v612
    %v614 = vrot.slane %v468, %v613
    %v623 = vmul.f32 %v526, %v586
    %v624 = vmul.f32 %v527, %v590
    %v625 = vmul.f32 %v528, %v594
    %v626 = vmul.f32 %v529, %v598
    %v627 = vmul.f32 %v530, %v602
    %v628 = vmul.f32 %v531, %v606
    %v629 = vmul.f32 %v532, %v610
    %v630 = vmul.f32 %v533, %v614
    %v631 = vmul.f32 %v534, %v586
    %v632 = vmul.f32 %v535, %v590
    %v633 = vmul.f32 %v536, %v594
    %v634 = vmul.f32 %v537, %v598
    %v635 = vmul.f32 %v538, %v602
    %v636 = vmul.f32 %v539, %v606
    %v637 = vmul.f32 %v540, %v610
    %v638 = vmul.f32 %v541, %v614
    %v639 = vmul.f32 %v542, %v586
    %v640 = vmul.f32 %v543, %v590
    %v641 = vmul.f32 %v544, %v594
    %v642 = vmul.f32 %v545, %v598
    %v643 = vmul.f32 %v546, %v602
    %v644 = vmul.f32 %v547, %v606
    %v645 = vmul.f32 %v548, %v610
    %v646 = vmul.f32 %v549, %v614
    %v647 = vmul.f32 %v550, %v586
    %v648 = vmul.f32 %v551, %v590
    %v649 = vmul.f32 %v552, %v594
    %v650 = vmul.f32 %v553, %v598
    %v651 = vmul.f32 %v554, %v602
    %v652 = vmul.f32 %v555, %v606
    %v653 = vmul.f32 %v556, %v610
    %v654 = vmul.f32 %v557, %v614
    %v655 = vmul.f32 %v558, %v586
    %v656 = vmul.f32 %v559, %v590
    %v657 = vmul.f32 %v560, %v594
    %v658 = vmul.f32 %v561, %v598
    %v659 = vmul.f32 %v562, %v602
    %v660 = vmul.f32 %v563, %v606
    %v661 = vmul.f32 %v564, %v610
    %v662 = vmul.f32 %v565, %v614
    %v663 = vmul.f32 %v566, %v586
    %v664 = vmul.f32 %v567, %v590
    %v665 = vmul.f32 %v568, %v594
    %v666 = vmul.f32 %v569, %v598
    %v667 = vmul.f32 %v570, %v602
    %v668 = vmul.f32 %v571, %v606
    %v669 = vmul.f32 %v572, %v610
    %v670 = vmul.f32 %v573, %v614
    %v671 = vmul.f32 %v574, %v586
    %v672 = vmul.f32 %v575, %v590
    %v673 = vmul.f32 %v576, %v594
    %v674 = vmul.f32 %v577, %v598
    %v675 = vmul.f32 %v578, %v602
    %v676 = vmul.f32 %v579, %v606
    %v677 = vmul.f32 %v580, %v610
    %v678 = vmul.f32 %v581, %v614
    %v680 = vlaneseq
    %v681 = vshrl.u32 %v680, 7
    %v682 = vsub.s32 0, %v681
    %v683 = vrot.slane %v469, %v682
    %v684 = vlaneseq
    %v685 = vshrl.u32 %v684, 7
    %v686 = vsub.s32 1, %v685
    %v687 = vrot.slane %v469, %v686
    %v688 = vlaneseq
    %v689 = vshrl.u32 %v688, 7
    %v690 = vsub.s32 2, %v689
    %v691 = vrot.slane %v469, %v690
    %v692 = vlaneseq
    %v693 = vshrl.u32 %v692, 7
    %v694 = vsub.s32 3, %v693
    %v695 = vrot.slane %v469, %v694
    %v696 = vlaneseq
    %v697 = vshrl.u32 %v696, 7
    %v698 = vsub.s32 4, %v697
    %v699 = vrot.slane %v469, %v698
    %v700 = vlaneseq
    %v701 = vshrl.u32 %v700, 7
    %v702 = vsub.s32 5, %v701
    %v703 = vrot.slane %v469, %v702
    %v704 = vlaneseq
    %v705 = vshrl.u32 %v704, 7
    %v706 = vsub.s32 6, %v705
    %v707 = vrot.slane %v469, %v706
    %v708 = vlaneseq
    %v709 = vshrl.u32 %v708, 7
    %v710 = vsub.s32 7, %v709
    %v711 = vrot.slane %v469, %v710
    %v720 = vadd.f32 %v623, %v683
    %v721 = vadd.f32 %v624, %v687
    %v722 = vadd.f32 %v625, %v691
    %v723 = vadd.f32 %v626, %v695
    %v724 = vadd.f32 %v627, %v699
    %v725 = vadd.f32 %v628, %v703
    %v726 = vadd.f32 %v629, %v707
    %v727 = vadd.f32 %v630, %v711
    %v728 = vadd.f32 %v631, %v683
    %v729 = vadd.f32 %v632, %v687
    %v730 = vadd.f32 %v633, %v691
    %v731 = vadd.f32 %v634, %v695
    %v732 = vadd.f32 %v635, %v699
    %v733 = vadd.f32 %v636, %v703
    %v734 = vadd.f32 %v637, %v707
    %v735 = vadd.f32 %v638, %v711
    %v736 = vadd.f32 %v639, %v683
    %v737 = vadd.f32 %v640, %v687
    %v738 = vadd.f32 %v641, %v691
    %v739 = vadd.f32 %v642, %v695
    %v740 = vadd.f32 %v643, %v699
    %v741 = vadd.f32 %v644, %v703
    %v742 = vadd.f32 %v645, %v707
    %v743 = vadd.f32 %v646, %v711
    %v744 = vadd.f32 %v647, %v683
    %v745 = vadd.f32 %v648, %v687
    %v746 = vadd.f32 %v649, %v691
    %v747 = vadd.f32 %v650, %v695
    %v748 = vadd.f32 %v651, %v699
    %v749 = vadd.f32 %v652, %v703
    %v750 = vadd.f32 %v653, %v707
    %v751 = vadd.f32 %v654, %v711
    %v752 = vadd.f32 %v655, %v683
    %v753 = vadd.f32 %v656, %v687
    %v754 = vadd.f32 %v657, %v691
    %v755 = vadd.f32 %v658, %v695
    %v756 = vadd.f32 %v659, %v699
    %v757 = vadd.f32 %v660, %v703
    %v758 = vadd.f32 %v661, %v707
    %v759 = vadd.f32 %v662, %v711
    %v760 = vadd.f32 %v663, %v683
    %v761 = vadd.f32 %v664, %v687
    %v762 = vadd.f32 %v665, %v691
    %v763 = vadd.f32 %v666, %v695
    %v764 = vadd.f32 %v667, %v699
    %v765 = vadd.f32 %v668, %v703
    %v766 = vadd.f32 %v669, %v707
    %v767 = vadd.f32 %v670, %v711
    %v768 = vadd.f32 %v671, %v683
    %v769 = vadd.f32 %v672, %v687
    %v770 = vadd.f32 %v673, %v691
    %v771 = vadd.f32 %v674, %v695
    %v772 = vadd.f32 %v675, %v699
    %v773 = vadd.f32 %v676, %v703
    %v774 = vadd.f32 %v677, %v707
    %v775 = vadd.f32 %v678, %v711
    %776 = vst [vmem:[#allocation10] sm:$0xff] %v720
    %777 = vst [vmem:[#allocation10 + $0x8] sm:$0xff] %v721
    %778 = vst [vmem:[#allocation10 + $0x10] sm:$0xff] %v722
    %779 = vst [vmem:[#allocation10 + $0x18] sm:$0xff] %v723
    %780 = vst [vmem:[#allocation10 + $0x20] sm:$0xff] %v724
    %781 = vst [vmem:[#allocation10 + $0x28] sm:$0xff] %v725
    %782 = vst [vmem:[#allocation10 + $0x30] sm:$0xff] %v726
    %783 = vst [vmem:[#allocation10 + $0x38] sm:$0xff] %v727
    %784 = vst [vmem:[#allocation10 + $0x40] sm:$0xff] %v728
    %785 = vst [vmem:[#allocation10 + $0x48] sm:$0xff] %v729
    %786 = vst [vmem:[#allocation10 + $0x50] sm:$0xff] %v730
    %787 = vst [vmem:[#allocation10 + $0x58] sm:$0xff] %v731
    %788 = vst [vmem:[#allocation10 + $0x60] sm:$0xff] %v732
    %789 = vst [vmem:[#allocation10 + $0x68] sm:$0xff] %v733
    %790 = vst [vmem:[#allocation10 + $0x70] sm:$0xff] %v734
    %791 = vst [vmem:[#allocation10 + $0x78] sm:$0xff] %v735
    %792 = vst [vmem:[#allocation10 + $0x80] sm:$0xff] %v736
    %793 = vst [vmem:[#allocation10 + $0x88] sm:$0xff] %v737
    %794 = vst [vmem:[#allocation10 + $0x90] sm:$0xff] %v738
    %795 = vst [vmem:[#allocation10 + $0x98] sm:$0xff] %v739
    %796 = vst [vmem:[#allocation10 + $0xa0] sm:$0xff] %v740
    %797 = vst [vmem:[#allocation10 + $0xa8] sm:$0xff] %v741
    %798 = vst [vmem:[#allocation10 + $0xb0] sm:$0xff] %v742
    %799 = vst [vmem:[#allocation10 + $0xb8] sm:$0xff] %v743
    %800 = vst [vmem:[#allocation10 + $0xc0] sm:$0xff] %v744
    %801 = vst [vmem:[#allocation10 + $0xc8] sm:$0xff] %v745
    %802 = vst [vmem:[#allocation10 + $0xd0] sm:$0xff] %v746
    %803 = vst [vmem:[#allocation10 + $0xd8] sm:$0xff] %v747
    %804 = vst [vmem:[#allocation10 + $0xe0] sm:$0xff] %v748
    %805 = vst [vmem:[#allocation10 + $0xe8] sm:$0xff] %v749
    %806 = vst [vmem:[#allocation10 + $0xf0] sm:$0xff] %v750
    %807 = vst [vmem:[#allocation10 + $0xf8] sm:$0xff] %v751
    %808 = vst [vmem:[#allocation10 + $0x100] sm:$0xff] %v752
    %809 = vst [vmem:[#allocation10 + $0x108] sm:$0xff] %v753
    %810 = vst [vmem:[#allocation10 + $0x110] sm:$0xff] %v754
    %811 = vst [vmem:[#allocation10 + $0x118] sm:$0xff] %v755
    %812 = vst [vmem:[#allocation10 + $0x120] sm:$0xff] %v756
    %813 = vst [vmem:[#allocation10 + $0x128] sm:$0xff] %v757
    %814 = vst [vmem:[#allocation10 + $0x130] sm:$0xff] %v758
    %815 = vst [vmem:[#allocation10 + $0x138] sm:$0xff] %v759
    %816 = vst [vmem:[#allocation10 + $0x140] sm:$0xff] %v760
    %817 = vst [vmem:[#allocation10 + $0x148] sm:$0xff] %v761
    %818 = vst [vmem:[#allocation10 + $0x150] sm:$0xff] %v762
    %819 = vst [vmem:[#allocation10 + $0x158] sm:$0xff] %v763
    %820 = vst [vmem:[#allocation10 + $0x160] sm:$0xff] %v764
    %821 = vst [vmem:[#allocation10 + $0x168] sm:$0xff] %v765
    %822 = vst [vmem:[#allocation10 + $0x170] sm:$0xff] %v766
    %823 = vst [vmem:[#allocation10 + $0x178] sm:$0xff] %v767
    %824 = vst [vmem:[#allocation10 + $0x180] sm:$0xff] %v768
    %825 = vst [vmem:[#allocation10 + $0x188] sm:$0xff] %v769
    %826 = vst [vmem:[#allocation10 + $0x190] sm:$0xff] %v770
    %827 = vst [vmem:[#allocation10 + $0x198] sm:$0xff] %v771
    %828 = vst [vmem:[#allocation10 + $0x1a0] sm:$0xff] %v772
    %829 = vst [vmem:[#allocation10 + $0x1a8] sm:$0xff] %v773
    %830 = vst [vmem:[#allocation10 + $0x1b0] sm:$0xff] %v774
    %831 = vst [vmem:[#allocation10 + $0x1b8] sm:$0xff] %v775
    // Predicated region
    $region34: #{tpu_custom_call.1} parent=1 // pred_check
      _
    $region35: #{tpu_custom_call.1} parent=1 // pred_check_branch
      %833 = sbr.rel (0) target = $region37
    $region36: #{tpu_custom_call.1} parent=1 // pred_region
      %s835 = ssub.s32 7168, 7168
      %836 = vsyncadd [#allocation4], %s835
      %s837 = sshll.u32 [#allocation10], 4
      %s838 = int_to_ptr.vmem [resolvable:$true] %s837
      %843 = dma.vmem_to_hbm [thread:$0]  %s838, 7168, %s4, [#allocation4], 1024, 1024, 64
    $region37: #{tpu_custom_call.1} parent=1 // pred_fallthru
      _
    // Predicated region
    $region38: #{tpu_custom_call.1} parent=1 // pred_check
      _
    $region39: #{tpu_custom_call.1} parent=1 // pred_check_branch
      %845 = sbr.rel (0) target = $region41
    $region40: #{tpu_custom_call.1} parent=1 // pred_region
      %846 = dma.done [#allocation4], 7168
    $region41: #{tpu_custom_call.1} parent=1 // pred_fallthru
      _
    %847 = vsyncpa [#allocation3], 1
    %848 = vsyncpa [#allocation6], 1
    %849 = vsyncpa [#allocation9], 1
    %850 = vsyncpa [#allocation4], 1

</llo_original>
